<compile_context>
chip_gen: v5e
topology: v5e:2x2
jax: 0.10.0
libtpu: 0.0.40
codegen_flags: <defaults>
</compile_context>

<pallas_src>
import math

import jax
import jax.numpy as jnp
from jax import lax
from jax.experimental import pallas as pl
from jax.experimental.pallas import tpu as pltpu

_LANE = 128
_INV_SQRT2 = 1.0 / math.sqrt(2.0)


def _round_up(n, m):
    return (n + m - 1) // m * m


def _cdiv(a, b):
    return (a + b - 1) // b


def _physical_vmem_bytes():
    """Per-core physical VMEM; conservative fallback if the query is unavailable."""
    try:
        info = pltpu.get_tpu_info()
        v = getattr(info, "vmem_capacity_bytes", None)
        if v:
            return int(v)
    except Exception:
        pass
    return 64 << 20  # v7x per-TC size: safe lower bound everywhere


def _resident_spec(block_shape):
    """BlockSpec for an operand that stays resident across all grid steps."""
    idx = lambda i: (0,) * len(block_shape)
    try:
        # Constant index_map -> never re-DMA'd; single buffer halves its VMEM.
        return pl.BlockSpec(block_shape, idx, pipeline_mode=pl.Buffered(1))
    except (TypeError, AttributeError):
        return pl.BlockSpec(block_shape, idx)


def _head_kernel(x_ref, w1_ref, b1_ref, w2_ref, b2_ref, o_ref):
    x = x_ref[...]
    if x.dtype != w1_ref.dtype:          # cast to MXU operand dtype in VMEM
        x = x.astype(w1_ref.dtype)

    # FC1 on the MXU, f32 accumulation.
    h = jnp.dot(x, w1_ref[...], preferred_element_type=jnp.float32)
    h = h + b1_ref[...]                  # bias kept f32

    # Exact erf-GELU (matches torch.nn.GELU() default); epilogue stays f32.
    h = 0.5 * h * (1.0 + lax.erf(h * _INV_SQRT2))

    # Dropout: identity in eval/inference mode.
    # TODO(synk): training-mode dropout would need pltpu.prng_seed +
    # pltpu.prng_random_bits and a 1/(1-p) rescale.

    # FC2 on the MXU.
    out = jnp.dot(h.astype(w2_ref.dtype), w2_ref[...],
                  preferred_element_type=jnp.float32)
    out = out + b2_ref[...]              # bias kept f32
    o_ref[...] = out.astype(o_ref.dtype)


def prepare_params(w1, b1, w2, b2, *, matmul_dtype=None):
    """Pad/cast weights ONCE (they are static at inference) for the fused head.

    w1:(E,H), b1:(1,H) or (H,), w2:(H,C), b2:(1,C) or (C,).
    Hidden/class dims are lane-padded to 128 so both matmuls are full-width MXU
    pushes and the output store is an unmasked, lane-dense vst.
    """
    E, H = w1.shape
    C = w2.shape[1]
    md = jnp.dtype(matmul_dtype) if matmul_dtype is not None else jnp.dtype(w1.dtype)
    Hp = _round_up(H, _LANE)
    Cp = _round_up(C, _LANE)
    f32 = jnp.float32
    w1p = jnp.zeros((E, Hp), md).at[:, :H].set(w1.astype(md))
    b1p = jnp.zeros((1, Hp), f32).at[:, :H].set(jnp.reshape(b1, (1, H)).astype(f32))
    w2p = jnp.zeros((Hp, Cp), md).at[:H, :C].set(w2.astype(md))
    b2p = jnp.zeros((1, Cp), f32).at[:, :C].set(jnp.reshape(b2, (1, C)).astype(f32))
    return {"w1": w1p, "b1": b1p, "w2": w2p, "b2": b2p,
            "E": E, "H": H, "C": C, "Hp": Hp, "Cp": Cp, "md": md}


def classification_head(x, params, *, tile_b=256):
    """Fused FC1 -> GELU -> Dropout(eval) -> FC2.

    x: (B, E), params: output of prepare_params().  Returns (B, C) in x.dtype.
    tile_b=256 keeps grid_b >= 2 for moderate batches (both v7x TCs busy);
    raise to 512/1024 on v5e/v6e for very large B.
    """
    B, E = x.shape
    assert E == params["E"], "embed_dim mismatch with prepared params"
    Hp, Cp, C = params["Hp"], params["Cp"], params["C"]
    md = params["md"]
    out_dtype = x.dtype

    sub = 16 if md.itemsize == 2 else 8          # sublane packing granularity

    # Balanced batch tiling: padding is < one sublane group, tail handled by grid.
    n_tiles = max(1, _cdiv(B, max(tile_b, sub)))
    TILE_B = _round_up(_cdiv(B, n_tiles), sub)
    if TILE_B >= B:
        TILE_B = B                               # single full-extent block (always legal)
    grid_b = _cdiv(B, TILE_B)

    x_isz = jnp.dtype(x.dtype).itemsize
    act_isz = md.itemsize
    out_isz = jnp.dtype(out_dtype).itemsize

    # VMEM budget: double-buffered x/out tiles, single-buffered resident
    # weights/biases, plus the in-kernel intermediates (x cast, f32 hidden,
    # hidden cast for FC2).
    vmem_needed = (
        2 * TILE_B * E * x_isz
        + 2 * TILE_B * Cp * out_isz
        + (E * Hp + Hp * Cp) * act_isz
        + (Hp + Cp) * 4
        + TILE_B * Hp * 4
        + TILE_B * Hp * act_isz
        + TILE_B * E * act_isz
    )
    vmem_cap = (_physical_vmem_bytes() * 3) // 4   # leave compiler/DMA headroom
    vmem_limit = int(min(max((vmem_needed * 3) // 2, 32 << 20), vmem_cap))
    # TODO(synk): for embed dims where resident w1 no longer fits the budget
    # (big E on v7x), add a K-grid reduction axis over E with an f32 acc scratch.

    flops = 2 * B * (E * Hp + Hp * Cp)
    transcendentals = B * Hp                       # erf per hidden activation
    bytes_accessed = (B * E * x_isz
                      + (E * Hp + Hp * Cp) * act_isz
                      + (Hp + Cp) * 4
                      + B * Cp * out_isz)

    out_padded = pl.pallas_call(
        _head_kernel,
        out_shape=jax.ShapeDtypeStruct((B, Cp), out_dtype),
        grid=(grid_b,),
        in_specs=[
            pl.BlockSpec((TILE_B, E), lambda i: (i, 0)),   # raw x, batch-tiled
            _resident_spec((E, Hp)),                        # weights stay resident
            _resident_spec((1, Hp)),
            _resident_spec((Hp, Cp)),
            _resident_spec((1, Cp)),
        ],
        out_specs=pl.BlockSpec((TILE_B, Cp), lambda i: (i, 0)),
        compiler_params=pltpu.CompilerParams(
            dimension_semantics=("parallel",),   # v7x: shard batch tiles over 2 TCs
            vmem_limit_bytes=vmem_limit,
        ),
        cost_estimate=pl.CostEstimate(
            flops=flops,
            transcendentals=transcendentals,
            bytes_accessed=bytes_accessed,
        ),
    )(x, params["w1"], params["b1"], params["w2"], params["b2"])

    # Lane-padded classes are sliced off (cheap, lane-dense store inside kernel).
    return out_padded[:, :C]


def init_params(key, embed_dim, classes, dtype=jnp.float32):
    """Deterministic init mimicking nn.Linear (uniform +/- 1/sqrt(fan_in))."""
    hidden = embed_dim // 2
    k1, k2, k3, k4 = jax.random.split(key, 4)
    bound1 = 1.0 / math.sqrt(embed_dim)
    bound2 = 1.0 / math.sqrt(hidden)
    w1 = jax.random.uniform(k1, (embed_dim, hidden), dtype, -bound1, bound1)
    b1 = jax.random.uniform(k2, (1, hidden), dtype, -bound1, bound1)
    w2 = jax.random.uniform(k3, (hidden, classes), dtype, -bound2, bound2)
    b2 = jax.random.uniform(k4, (1, classes), dtype, -bound2, bound2)
    return w1, b1, w2, b2


if __name__ == "__main__":
    batch = 2
    embed_dim = 32
    classes = 10

    key = jax.random.PRNGKey(0)
    kx, kp = jax.random.split(key)
    x = jax.random.normal(kx, (batch, embed_dim), jnp.float32)
    w1, b1, w2, b2 = init_params(kp, embed_dim, classes)

    # Plain-JAX reference (same math: FC1 -> erf-GELU -> Dropout(eval) -> FC2).
    h_ref = x @ w1 + b1
    h_ref = 0.5 * h_ref * (1.0 + lax.erf(h_ref * _INV_SQRT2))
    ref = h_ref @ w2 + b2

    # Full-precision path: exact parity with torch.nn.GELU()/Linear math.
    params_f32 = prepare_params(w1, b1, w2, b2)           # pad/cast once, reuse
    logits_f32 = jax.block_until_ready(classification_head(x, params_f32))
    assert logits_f32.shape == (batch, classes)
    assert jnp.allclose(logits_f32, ref, atol=1e-5, rtol=1e-5)

    # bf16-MXU operand path (fast path on v5e/v6e/v7x); epilogue stays f32.
    params_bf16 = prepare_params(w1, b1, w2, b2, matmul_dtype=jnp.bfloat16)
    logits_bf16 = jax.block_until_ready(classification_head(x, params_bf16))
    assert logits_bf16.shape == (batch, classes)
    assert jnp.allclose(logits_bf16, ref, atol=3e-2, rtol=3e-2)

    print("KERNEL_OK")
</pallas_src>

<mosaic_0001>
module attributes {stable_mosaic.version = 11 : i64} {
  func.func @_head_kernel(%arg0: i32, %arg1: memref<2x32xf32, #tpu.memory_space<vmem>>, %arg2: memref<32x128xf32, #tpu.memory_space<vmem>>, %arg3: memref<1x128xf32, #tpu.memory_space<vmem>>, %arg4: memref<128x128xf32, #tpu.memory_space<vmem>>, %arg5: memref<1x128xf32, #tpu.memory_space<vmem>>, %arg6: memref<2x128xf32, #tpu.memory_space<vmem>>) attributes {dimension_semantics = [#tpu.dimension_semantics<parallel>], iteration_bounds = array<i64: 1>, scalar_prefetch = 0 : i64, scratch_operands = 0 : i64, tpu.core_type = #tpu.core_type<tc>, window_params = [{transform_indices = @transform_0, window_bounds = array<i64: 2, 32>}, {pipeline_mode = #tpu.pipeline_mode<synchronous>, transform_indices = @transform_1, window_bounds = array<i64: 32, 128>}, {pipeline_mode = #tpu.pipeline_mode<synchronous>, transform_indices = @transform_2, window_bounds = array<i64: 1, 128>}, {pipeline_mode = #tpu.pipeline_mode<synchronous>, transform_indices = @transform_3, window_bounds = array<i64: 128, 128>}, {pipeline_mode = #tpu.pipeline_mode<synchronous>, transform_indices = @transform_4, window_bounds = array<i64: 1, 128>}, {transform_indices = @transform_5, window_bounds = array<i64: 2, 128>}]} {
    %c0 = arith.constant 0 : index
    %c0_0 = arith.constant 0 : index
    %0 = vector.load %arg1[%c0, %c0_0] : memref<2x32xf32, #tpu.memory_space<vmem>>, vector<2x32xf32>
    %c0_1 = arith.constant 0 : index
    %c0_2 = arith.constant 0 : index
    %1 = vector.load %arg2[%c0_1, %c0_2] : memref<32x128xf32, #tpu.memory_space<vmem>>, vector<32x128xf32>
    %cst = arith.constant dense<0.000000e+00> : vector<2x128xf32>
    %2 = tpu.matmul %0, %1, %cst {dimension_numbers = #tpu.dot_dimension_numbers<[1], [0], [0], [1], [0, 0, 1, 1], [], []>} : vector<2x32xf32>, vector<32x128xf32>, vector<2x128xf32> -> vector<2x128xf32>
    %c0_3 = arith.constant 0 : index
    %c0_4 = arith.constant 0 : index
    %3 = vector.load %arg3[%c0_3, %c0_4] : memref<1x128xf32, #tpu.memory_space<vmem>>, vector<1x128xf32>
    %4 = vector.broadcast %3 : vector<1x128xf32> to vector<2x128xf32>
    %5 = arith.addf %2, %4 : vector<2x128xf32>
    %cst_5 = arith.constant 5.000000e-01 : f32
    %6 = vector.broadcast %cst_5 : f32 to vector<2x128xf32>
    %7 = arith.mulf %6, %5 : vector<2x128xf32>
    %cst_6 = arith.constant 0.707106769 : f32
    %8 = vector.broadcast %cst_6 : f32 to vector<2x128xf32>
    %9 = arith.mulf %5, %8 : vector<2x128xf32>
    %10 = math.erf %9 : vector<2x128xf32>
    %cst_7 = arith.constant 1.000000e+00 : f32
    %11 = vector.broadcast %cst_7 : f32 to vector<2x128xf32>
    %12 = arith.addf %11, %10 : vector<2x128xf32>
    %13 = arith.mulf %7, %12 : vector<2x128xf32>
    %c0_8 = arith.constant 0 : index
    %c0_9 = arith.constant 0 : index
    %14 = vector.load %arg4[%c0_8, %c0_9] : memref<128x128xf32, #tpu.memory_space<vmem>>, vector<128x128xf32>
    %cst_10 = arith.constant dense<0.000000e+00> : vector<2x128xf32>
    %15 = tpu.matmul %13, %14, %cst_10 {dimension_numbers = #tpu.dot_dimension_numbers<[1], [0], [0], [1], [0, 0, 1, 1], [], []>} : vector<2x128xf32>, vector<128x128xf32>, vector<2x128xf32> -> vector<2x128xf32>
    %c0_11 = arith.constant 0 : index
    %c0_12 = arith.constant 0 : index
    %16 = vector.load %arg5[%c0_11, %c0_12] : memref<1x128xf32, #tpu.memory_space<vmem>>, vector<1x128xf32>
    %17 = vector.broadcast %16 : vector<1x128xf32> to vector<2x128xf32>
    %18 = arith.addf %15, %17 : vector<2x128xf32>
    %c0_13 = arith.constant 0 : index
    %c0_14 = arith.constant 0 : index
    %19 = vector.load %arg6[%c0_13, %c0_14] : memref<2x128xf32, #tpu.memory_space<vmem>>, vector<2x128xf32>
    tpu.vector_store %arg6[%c0_13, %c0_14], %18 {strides = array<i32>} : memref<2x128xf32, #tpu.memory_space<vmem>>, vector<2x128xf32>,
    return
  }
  func.func @transform_0(%arg0: i32) -> (i32, i32) {
    %c0_i32 = arith.constant 0 : i32
    %c0_i32_0 = arith.constant 0 : i32
    return %arg0, %c0_i32 : i32, i32
  }
  func.func @transform_1(%arg0: i32) -> (i32, i32) {
    %c0_i32 = arith.constant 0 : i32
    %c0_i32_0 = arith.constant 0 : i32
    %c0_i32_1 = arith.constant 0 : i32
    return %c0_i32, %c0_i32_0 : i32, i32
  }
  func.func @transform_2(%arg0: i32) -> (i32, i32) {
    %c0_i32 = arith.constant 0 : i32
    %c0_i32_0 = arith.constant 0 : i32
    %c0_i32_1 = arith.constant 0 : i32
    return %c0_i32, %c0_i32_0 : i32, i32
  }
  func.func @transform_3(%arg0: i32) -> (i32, i32) {
    %c0_i32 = arith.constant 0 : i32
    %c0_i32_0 = arith.constant 0 : i32
    %c0_i32_1 = arith.constant 0 : i32
    return %c0_i32, %c0_i32_0 : i32, i32
  }
  func.func @transform_4(%arg0: i32) -> (i32, i32) {
    %c0_i32 = arith.constant 0 : i32
    %c0_i32_0 = arith.constant 0 : i32
    %c0_i32_1 = arith.constant 0 : i32
    return %c0_i32, %c0_i32_0 : i32, i32
  }
  func.func @transform_5(%arg0: i32) -> (i32, i32) {
    %c0_i32 = arith.constant 0 : i32
    %c0_i32_0 = arith.constant 0 : i32
    return %arg0, %c0_i32 : i32, i32
  }
}

</mosaic_0001>

<llo_original>
// kernel: tpu_custom_call.1
$region0: #{tpu_custom_call.1}
  #allocation0 [shape = 'u32[]', space=smem, size = 0x4, offset = 0x4, fixed_abs, tag = 'smem constant byte address 0x4 - core index']
  #allocation1 [shape = 'u32[72,128]{1,0:T(1,128)}', space=vmem, size = 0x9000, scoped, tag = 'internal scratch']
  %s0 = inlined_call_operand.hbm [shape: f32[2,32], index: 0, kind: input, shape index: {}]
  %s1 = inlined_call_operand.hbm [shape: f32[32,128], index: 1, kind: input, shape index: {}]
  %s2 = inlined_call_operand.vmem [shape: f32[1,128], index: 2, kind: input, shape index: {}]
  %s3 = inlined_call_operand.hbm [shape: f32[128,128], index: 3, kind: input, shape index: {}]
  %s4 = inlined_call_operand.vmem [shape: f32[1,128], index: 4, kind: input, shape index: {}]
  %s5 = inlined_call_operand.hbm [shape: f32[2,128], index: 5, kind: output, shape index: {}]
  %s6 = sld [smem:[#allocation0]]
  $region42: #{tpu_custom_call.1} parent=0
    _
  %s8 = ssub.s32 1, %s6
  %s9 = scalar_select 0, %s8, %s6
  $region1: #{tpu_custom_call.1} parent=0
    #allocation2 [shape = 'u8[1024]{0}', space=vmem, size = 0x400, scoped, tag = 'input window, operand 0, single buffered']
    #allocation3 [shape = 's32[1]{0}', space=sflag, size = 0x4, scoped, tag = 'scoped memory for tpu_custom_call.1']
    #allocation4 [shape = 's32[1]{0}', space=sflag, size = 0x4, scoped, tag = 'scoped memory for tpu_custom_call.1']
    #allocation5 [shape = 'u8[16384]{0}', space=vmem, size = 0x4000, scoped, tag = 'input window, operand 1, single buffered']
    #allocation6 [shape = 's32[1]{0}', space=sflag, size = 0x4, scoped, tag = 'scoped memory for tpu_custom_call.1']
    #allocation7 [shape = 'u8[65536]{0}', space=vmem, size = 0x10000, scoped, tag = 'input window, operand 3, single buffered']
    #allocation8 [shape = 'u8[1024]{0}', space=vmem, size = 0x400, scoped, tag = 'output window, operand 0, single buffered']
    %10 = vsyncpa [#allocation3], 0
    %11 = vsyncpa [#allocation6], 0
    %12 = vsyncpa [#allocation4], 0
    // Predicated region
    $region2: #{tpu_custom_call.1} parent=1 // pred_check
      _
    $region3: #{tpu_custom_call.1} parent=1 // pred_check_branch
      %14 = sbr.rel (0) target = $region5
    $region4: #{tpu_custom_call.1} parent=1 // pred_region
      %16 = vsyncadd [#allocation3], 0
      %s18 = sshll.u32 %s0, 4
      %s19 = int_to_ptr.hbm [resolvable:$true] %s18
      %s20 = sshll.u32 [#allocation2], 4
      %s21 = int_to_ptr.vmem [resolvable:$true] %s20
      %23 = dma.hbm_to_vmem [thread:$0]  %s19, 32, %s21, [#allocation3]
    $region5: #{tpu_custom_call.1} parent=1 // pred_fallthru
      _
    // Predicated region
    $region6: #{tpu_custom_call.1} parent=1 // pred_check
      _
    $region7: #{tpu_custom_call.1} parent=1 // pred_check_branch
      %25 = sbr.rel (0) target = $region9
    $region8: #{tpu_custom_call.1} parent=1 // pred_region
      %27 = vsyncadd [#allocation6], 0
      %s28 = sshll.u32 %s1, 4
      %s29 = int_to_ptr.hbm [resolvable:$true] %s28
      %s30 = sshll.u32 [#allocation5], 4
      %s31 = int_to_ptr.vmem [resolvable:$true] %s30
      %36 = dma.hbm_to_vmem [thread:$0]  %s29, 512, %s31, [#allocation6], 128, 128, 8
    $region9: #{tpu_custom_call.1} parent=1 // pred_fallthru
      _
    // Predicated region
    $region10: #{tpu_custom_call.1} parent=1 // pred_check
      _
    $region11: #{tpu_custom_call.1} parent=1 // pred_check_branch
      %38 = sbr.rel (0) target = $region13
    $region12: #{tpu_custom_call.1} parent=1 // pred_region
      _
    $region13: #{tpu_custom_call.1} parent=1 // pred_fallthru
      _
    // Predicated region
    $region14: #{tpu_custom_call.1} parent=1 // pred_check
      _
    $region15: #{tpu_custom_call.1} parent=1 // pred_check_branch
      %40 = sbr.rel (0) target = $region17
    $region16: #{tpu_custom_call.1} parent=1 // pred_region
      %42 = vsyncadd [#allocation6], 0
      %s43 = sshll.u32 %s3, 4
      %s44 = int_to_ptr.hbm [resolvable:$true] %s43
      %s45 = sshll.u32 [#allocation7], 4
      %s46 = int_to_ptr.vmem [resolvable:$true] %s45
      %51 = dma.hbm_to_vmem [thread:$0]  %s44, 2048, %s46, [#allocation6], 128, 128, 8
    $region17: #{tpu_custom_call.1} parent=1 // pred_fallthru
      _
    // Predicated region
    $region18: #{tpu_custom_call.1} parent=1 // pred_check
      _
    $region19: #{tpu_custom_call.1} parent=1 // pred_check_branch
      %53 = sbr.rel (0) target = $region21
    $region20: #{tpu_custom_call.1} parent=1 // pred_region
      _
    $region21: #{tpu_custom_call.1} parent=1 // pred_fallthru
      _
    // Predicated region
    $region22: #{tpu_custom_call.1} parent=1 // pred_check
      _
    $region23: #{tpu_custom_call.1} parent=1 // pred_check_branch
      %55 = sbr.rel (0) target = $region25
    $region24: #{tpu_custom_call.1} parent=1 // pred_region
      %57 = dma.done [#allocation3], 32
    $region25: #{tpu_custom_call.1} parent=1 // pred_fallthru
      _
    // Predicated region
    $region26: #{tpu_custom_call.1} parent=1 // pred_check
      _
    $region27: #{tpu_custom_call.1} parent=1 // pred_check_branch
      %59 = sbr.rel (0) target = $region29
    $region28: #{tpu_custom_call.1} parent=1 // pred_region
      %61 = dma.done [#allocation6], 512
    $region29: #{tpu_custom_call.1} parent=1 // pred_fallthru
      _
    // Predicated region
    $region30: #{tpu_custom_call.1} parent=1 // pred_check
      _
    $region31: #{tpu_custom_call.1} parent=1 // pred_check_branch
      %63 = sbr.rel (0) target = $region33
    $region32: #{tpu_custom_call.1} parent=1 // pred_region
      %65 = dma.done [#allocation6], 2048
    $region33: #{tpu_custom_call.1} parent=1 // pred_fallthru
      _
    %v66 = vld [vmem:[#allocation2] sm:$0x3]
    %v67 = vld [vmem:[#allocation5] sm:$0xff]
    %v68 = vld [vmem:[#allocation5 + $0x8] sm:$0xff]
    %v69 = vld [vmem:[#allocation5 + $0x10] sm:$0xff]
    %v70 = vld [vmem:[#allocation5 + $0x18] sm:$0xff]
    %v71 = vld [vmem:[%s2] sm:$0x1]
    %v73 = vperm.slane %v71, 0
    %vm75 = vcmask 261120
    %v77 = vsel %vm75, %v66, 0
    %79 = vmatpush.msra.mxu0 0.0
    %80 = vmatpush.msra.mxu0 0.0
    %81 = vmatpush.msra.mxu0 0.0
    %82 = vmatpush.msra.mxu0 0.0
    %83 = vmatpush.msra.mxu0 0.0
    %84 = vmatpush.msra.mxu0 0.0
    %85 = vmatpush.msra.mxu0 0.0
    %86 = vmatpush.msra.mxu0 0.0
    %87 = vmatpush.msra.mxu0 0.0
    %88 = vmatpush.msra.mxu0 0.0
    %89 = vmatpush.msra.mxu0 0.0
    %90 = vmatpush.msra.mxu0 0.0
    %91 = vmatpush.msra.mxu0 %v70
    %92 = vmatpush.msra.mxu0 %v69
    %93 = vmatpush.msra.mxu0 %v68
    %94 = vmatpush.msra.mxu0 %v67
    %95 = vmatmul.f32.gmra.mxu0 %v77
    %v96 = vpop.f32.mrf.mxu0
    %v97 = vadd.f32 %v73, %v96
    %98 = vdwg.mxu0
    %v99 = vmul.f32 %v97, 0.5
    %v100 = vmul.f32 %v97, 0.70710677
    %v101 = vmul.f32 %v100, %v100
    %v102 = vmin.f32 16.0, %v101
    %v103 = vmul.f32 %v102, 2.1237322e-06
    %v104 = vadd.f32 %v103, 0.00028619796
    %v105 = vmul.f32 %v102, %v104
    %v106 = vadd.f32 %v105, 0.0036580483
    %v107 = vmul.f32 %v102, %v106
    %v108 = vadd.f32 %v107, 0.05243302
    %v109 = vmul.f32 %v102, %v108
    %v110 = vadd.f32 %v109, 0.18741608
    %v111 = vmul.f32 %v102, %v110
    %v112 = vadd.f32 %v111, 1.1283791
    %v113 = vmul.f32 %v100, %v112
    %v114 = vmul.f32 %v102, 3.8918573e-05
    %v115 = vadd.f32 %v114, 0.001143296
    %v116 = vmul.f32 %v102, %v115
    %v117 = vadd.f32 %v116, 0.014752088
    %v118 = vmul.f32 %v102, %v117
    %v119 = vadd.f32 %v118, 0.112945676
    %v120 = vmul.f32 %v102, %v119
    %v121 = vadd.f32 %v120, 0.4994258
    %v122 = vmul.f32 %v102, %v121
    %v123 = vadd.f32 %v122, 1.0
    %v124 = vrcp.pop %v123
    %v125 = vmul.f32 %v123, %v124
    %v126 = vsub.f32 1.0, %v125
    %v127 = vmul.f32 %v124, %v126
    %v128 = vadd.f32 %v124, %v127
    %vm129 = vweird.f32 %v123
    %vm130 = vweird.f32 %v124
    %vm131 = vmor %vm129, %vm130
    %v132 = vsel %vm131, %v124, %v128
    %v133 = vand.u32 2147483647, %v123
    %vm134 = vcmp.eq.f32.partialorder %v133, 8.507059e+37
    %v135 = vand.u32 %v123, 2147483648
    %v136 = vor.u32 1.1754944e-38, %v135
    %v137 = vsel %vm134, %v136, %v132
    %v138 = vmul.f32 %v113, %v137
    %v139 = vmin.f32 %v138, 1.0
    %v140 = vmax.f32 %v139, -1.0
    %v141 = vadd.f32 %v140, 1.0
    %v142 = vmul.f32 %v99, %v141
    %v143 = vld [vmem:[#allocation7] sm:$0xff]
    %v144 = vld [vmem:[#allocation7 + $0x8] sm:$0xff]
    %v145 = vld [vmem:[#allocation7 + $0x10] sm:$0xff]
    %v146 = vld [vmem:[#allocation7 + $0x18] sm:$0xff]
    %v147 = vld [vmem:[#allocation7 + $0x20] sm:$0xff]
    %v148 = vld [vmem:[#allocation7 + $0x28] sm:$0xff]
    %v149 = vld [vmem:[#allocation7 + $0x30] sm:$0xff]
    %v150 = vld [vmem:[#allocation7 + $0x38] sm:$0xff]
    %v151 = vld [vmem:[#allocation7 + $0x40] sm:$0xff]
    %v152 = vld [vmem:[#allocation7 + $0x48] sm:$0xff]
    %v153 = vld [vmem:[#allocation7 + $0x50] sm:$0xff]
    %v154 = vld [vmem:[#allocation7 + $0x58] sm:$0xff]
    %v155 = vld [vmem:[#allocation7 + $0x60] sm:$0xff]
    %v156 = vld [vmem:[#allocation7 + $0x68] sm:$0xff]
    %v157 = vld [vmem:[#allocation7 + $0x70] sm:$0xff]
    %v158 = vld [vmem:[#allocation7 + $0x78] sm:$0xff]
    %v159 = vld [vmem:[%s4] sm:$0x1]
    %v161 = vperm.slane %v159, 0
    %163 = vmatpush.msra.mxu0 %v158
    %164 = vmatpush.msra.mxu0 %v157
    %165 = vmatpush.msra.mxu0 %v156
    %166 = vmatpush.msra.mxu0 %v155
    %167 = vmatpush.msra.mxu0 %v154
    %168 = vmatpush.msra.mxu0 %v153
    %169 = vmatpush.msra.mxu0 %v152
    %170 = vmatpush.msra.mxu0 %v151
    %171 = vmatpush.msra.mxu0 %v150
    %172 = vmatpush.msra.mxu0 %v149
    %173 = vmatpush.msra.mxu0 %v148
    %174 = vmatpush.msra.mxu0 %v147
    %175 = vmatpush.msra.mxu0 %v146
    %176 = vmatpush.msra.mxu0 %v145
    %177 = vmatpush.msra.mxu0 %v144
    %178 = vmatpush.msra.mxu0 %v143
    %179 = vmatmul.f32.gmra.mxu0 %v142
    %v180 = vpop.f32.mrf.mxu0
    %v181 = vadd.f32 %v161, %v180
    %182 = vdwg.mxu0
    %183 = vst [vmem:[#allocation8] sm:$0x3] %v181
    // Predicated region
    $region34: #{tpu_custom_call.1} parent=1 // pred_check
      _
    $region35: #{tpu_custom_call.1} parent=1 // pred_check_branch
      %185 = sbr.rel (0) target = $region37
    $region36: #{tpu_custom_call.1} parent=1 // pred_region
      %187 = vsyncadd [#allocation4], 0
      %s189 = sshll.u32 [#allocation8], 4
      %s190 = int_to_ptr.vmem [resolvable:$true] %s189
      %s191 = sshll.u32 %s5, 4
      %s192 = int_to_ptr.hbm [resolvable:$true] %s191
      %194 = dma.vmem_to_hbm [thread:$0]  %s190, 32, %s192, [#allocation4]
    $region37: #{tpu_custom_call.1} parent=1 // pred_fallthru
      _
    // Predicated region
    $region38: #{tpu_custom_call.1} parent=1 // pred_check
      _
    $region39: #{tpu_custom_call.1} parent=1 // pred_check_branch
      %196 = sbr.rel (0) target = $region41
    $region40: #{tpu_custom_call.1} parent=1 // pred_region
      %198 = dma.done [#allocation4], 32
    $region41: #{tpu_custom_call.1} parent=1 // pred_fallthru
      _
    %199 = vsyncpa [#allocation3], 1
    %200 = vsyncpa [#allocation6], 1
    %201 = vsyncpa [#allocation4], 1

</llo_original>
